<compile_context>
chip_gen: v7x
topology: tpu7x:2x2x1
jax: 0.10.0
libtpu: 0.0.40
codegen_flags: <defaults>
</compile_context>

<pallas_src>
import functools

import numpy as np
import jax
import jax.numpy as jnp
from jax.experimental import pallas as pl
from jax.experimental.pallas import tpu as pltpu

F32 = jnp.float32
MM_DTYPE = jnp.bfloat16            # MXU operand dtype (accumulation stays f32)
ALPHA = 0.25                       # nn.PReLU() default init
VMEM_LIMIT = 32 * 1024 * 1024      # well under v7x's 64 MiB physical VMEM


# ----------------------------------------------------------------------------
# Pallas kernels
# ----------------------------------------------------------------------------
def _mm_kernel(*refs, act, has_bias, has_res):
    """y = A @ B (+bias per row) (+act) (+residual); lane-dense output."""
    it = iter(refs)
    a_ref = next(it)
    b_ref = next(it)
    bias_ref = next(it) if has_bias else None
    res_ref = next(it) if has_res else None
    o_ref = next(it)

    y = jnp.dot(a_ref[...], b_ref[...], preferred_element_type=jnp.float32)
    if has_bias:
        y = y + bias_ref[...]
    if act == "relu":
        y = jnp.maximum(y, 0.0)
    elif act == "prelu":
        y = jnp.where(y >= 0.0, y, ALPHA * y)
    if has_res:
        y = y + res_ref[...]
    o_ref[...] = y


def _jbf_kernel(patch_ref, rk_ref, gk_ref, o_ref):
    """Accumulate one filter tap: out += patch * (rk*gk), broadcast over cpg."""
    @pl.when(pl.program_id(1) == 0)
    def _():
        o_ref[...] = jnp.zeros(o_ref.shape, o_ref.dtype)

    bk = rk_ref[...] * gk_ref[...]                       # (1, g, 1, HW)
    o_ref[...] = o_ref[...] + patch_ref[...] * bk        # (1, g, cpg, HW)


def _max_kernel(w_ref, o_ref):
    @pl.when(pl.program_id(0) == 0)
    def _():
        o_ref[...] = jnp.full(o_ref.shape, -jnp.inf, o_ref.dtype)

    o_ref[...] = jnp.maximum(o_ref[...], w_ref[0])


# ----------------------------------------------------------------------------
# Pallas wrappers
# ----------------------------------------------------------------------------
def _pick_tn(M, K, itemsize):
    """Lane-tile along M: <= 4 MiB per input block, prefer >= 2 grid steps."""
    cap = 4 * 1024 * 1024
    for tn in (2048, 1024, 512, 256, 128):
        if M % tn == 0 and tn * K * itemsize <= cap and M // tn >= 2:
            return tn
    return M  # tiny / oddly-sized M: single block (all cases here are small)


def matmul(a, b, bias=None, act=None, residual=None, compute_dtype=MM_DTYPE):
    """[P,K] @ [K,M] with fused bias (per row), activation and residual add.

    The output's last dim is M (lane-dense).  Operands are cast to
    `compute_dtype` (bf16 by default); accumulation and output are f32.
    """
    P, K = a.shape
    K2, M = b.shape
    assert K == K2
    tn = _pick_tn(M, K, jnp.dtype(compute_dtype).itemsize)

    args = [a.astype(compute_dtype), b.astype(compute_dtype)]
    in_specs = [
        pl.BlockSpec((P, K), lambda i: (0, 0)),
        pl.BlockSpec((K, tn), lambda i: (0, i)),
    ]
    if bias is not None:
        args.append(bias.reshape(P, 1).astype(F32))
        in_specs.append(pl.BlockSpec((P, 1), lambda i: (0, 0)))
    if residual is not None:
        args.append(residual.astype(F32))
        in_specs.append(pl.BlockSpec((P, tn), lambda i: (0, i)))

    return pl.pallas_call(
        functools.partial(_mm_kernel, act=act,
                          has_bias=bias is not None,
                          has_res=residual is not None),
        out_shape=jax.ShapeDtypeStruct((P, M), F32),
        grid=(M // tn,),
        in_specs=in_specs,
        out_specs=pl.BlockSpec((P, tn), lambda i: (0, i)),
        compiler_params=pltpu.CompilerParams(
            dimension_semantics=("parallel",),
            vmem_limit_bytes=VMEM_LIMIT,
        ),
    )(*args)


def im2col_t(x, kh, kw, stride, padding):
    """x: (N,C,H,W) -> cols (C*kh*kw, N*Ho*Wo); row order (cin, kh, kw)."""
    N, C, H, W = x.shape
    if padding:
        x = jnp.pad(x, ((0, 0), (0, 0), (padding, padding), (padding, padding)))
    Hp, Wp = H + 2 * padding, W + 2 * padding
    Ho = (Hp - kh) // stride + 1
    Wo = (Wp - kw) // stride + 1
    taps = []
    for i in range(kh):
        for j in range(kw):
            taps.append(
                x[:, :, i:i + (Ho - 1) * stride + 1:stride,
                      j:j + (Wo - 1) * stride + 1:stride])
    cols = jnp.stack(taps, axis=2)                        # (N, C, kh*kw, Ho, Wo)
    cols = cols.transpose(1, 2, 0, 3, 4).reshape(C * kh * kw, N * Ho * Wo)
    return cols, Ho, Wo
    # TODO(synk): fully fuse the tap extraction into the Pallas matmul (tap grid
    # axis + shifted BlockSpecs) to avoid materializing cols in HBM at scale.


def conv2d(x, w, b, stride, padding, act=None, residual=None):
    """PyTorch-semantics Conv2d; matmul + bias + act (+residual) in Pallas."""
    N, Cin, H, W = x.shape
    Cout, _, kh, kw = w.shape
    cols, Ho, Wo = im2col_t(x, kh, kw, stride, padding)
    wmat = w.reshape(Cout, Cin * kh * kw)
    res = None
    if residual is not None:                              # (N,Cout,Ho,Wo)
        res = residual.transpose(1, 0, 2, 3).reshape(Cout, N * Ho * Wo)
    y = matmul(wmat, cols, bias=b, act=act, residual=res)  # (Cout, N*Ho*Wo)
    return y.reshape(Cout, N, Ho, Wo).transpose(1, 0, 2, 3)


def deconv2d(x, w, b, act=None):
    """ConvTranspose2d(k=5, s=2, p=2, output_padding=1) via dilated conv."""
    N, Cin, H, W = x.shape
    _, Cout, kh, kw = w.shape
    s, p, op = 2, 2, 1
    Hd, Wd = (H - 1) * s + 1, (W - 1) * s + 1
    xd = jnp.zeros((N, Cin, Hd, Wd), x.dtype).at[:, :, ::s, ::s].set(x)
    lo, hi = kh - 1 - p, kh - 1 - p + op
    xp = jnp.pad(xd, ((0, 0), (0, 0), (lo, hi), (lo, hi)))
    w_eq = jnp.flip(w, axis=(2, 3)).transpose(1, 0, 2, 3)  # (Cout,Cin,kh,kw)
    return conv2d(xp, w_eq, b, stride=1, padding=0, act=act)


def maxpool2d(x, k=5, stride=2, pad=2):
    N, C, H, W = x.shape
    xp = jnp.pad(x, ((0, 0), (0, 0), (pad, pad), (pad, pad)),
                 constant_values=-np.inf)
    Ho = (H + 2 * pad - k) // stride + 1
    Wo = (W + 2 * pad - k) // stride + 1
    wins = []
    for i in range(k):
        for j in range(k):
            wins.append(
                xp[:, :, i:i + (Ho - 1) * stride + 1:stride,
                       j:j + (Wo - 1) * stride + 1:stride])
    wins = jnp.stack(wins, 0).reshape(k * k, N * C, Ho * Wo)   # lane-dense
    out = pl.pallas_call(
        _max_kernel,
        out_shape=jax.ShapeDtypeStruct((N * C, Ho * Wo), F32),
        grid=(k * k,),
        in_specs=[pl.BlockSpec((1, N * C, Ho * Wo), lambda i: (i, 0, 0))],
        out_specs=pl.BlockSpec((N * C, Ho * Wo), lambda i: (0, 0)),
        compiler_params=pltpu.CompilerParams(dimension_semantics=("arbitrary",)),
    )(wins)
    return out.reshape(N, C, Ho, Wo)


def jbf_filter(source, rk, gk, filter_size, group_num):
    """sum over taps of unfold(source) * (rk*gk grouped kernel); one pallas_call."""
    N, C, H, W = source.shape
    K = filter_size * filter_size
    g = group_num
    cpg = C // g
    HW = H * W
    pad = (filter_size - 1) // 2

    sp = jnp.pad(source, ((0, 0), (0, 0), (pad, pad), (pad, pad)))
    taps = []
    for i in range(filter_size):
        for j in range(filter_size):
            taps.append(sp[:, :, i:i + H, j:j + W])
    patch = jnp.stack(taps, axis=1).reshape(N * K, g, cpg, HW)   # (N*K,g,cpg,HW)
    rk_r = rk.reshape(N, g, K, HW).transpose(0, 2, 1, 3).reshape(N * K, g, 1, HW)
    gk_r = gk.reshape(N, g, K, HW).transpose(0, 2, 1, 3).reshape(N * K, g, 1, HW)

    out = pl.pallas_call(
        _jbf_kernel,
        out_shape=jax.ShapeDtypeStruct((N, g, cpg, HW), F32),
        grid=(N, K),                                   # batch parallel, taps reduce
        in_specs=[
            pl.BlockSpec((1, g, cpg, HW), lambda n, k: (n * K + k, 0, 0, 0)),
            pl.BlockSpec((1, g, 1, HW), lambda n, k: (n * K + k, 0, 0, 0)),
            pl.BlockSpec((1, g, 1, HW), lambda n, k: (n * K + k, 0, 0, 0)),
        ],
        out_specs=pl.BlockSpec((1, g, cpg, HW), lambda n, k: (n, 0, 0, 0)),
        compiler_params=pltpu.CompilerParams(
            dimension_semantics=("parallel", "arbitrary")),
    )(patch, rk_r, gk_r)
    return out.reshape(N, C, H, W)


# ----------------------------------------------------------------------------
# Bicubic upsample (PyTorch align_corners=False, a=-0.75) via the Pallas matmul
# ----------------------------------------------------------------------------
def _cubic_matrix_np(in_size, out_size, scale):
    A = -0.75
    i = np.arange(out_size)
    real = (i + 0.5) / scale - 0.5
    ix = np.floor(real)
    t = real - ix

    def cc1(x):  # |x| <= 1
        return ((A + 2.0) * x - (A + 3.0)) * x * x + 1.0

    def cc2(x):  # 1 < |x| < 2
        return ((A * x - 5.0 * A) * x + 8.0 * A) * x - 4.0 * A

    w = np.stack([cc2(t + 1.0), cc1(t), cc1(1.0 - t), cc2(2.0 - t)], axis=1)
    idx = np.clip(ix[:, None] + np.arange(-1, 3)[None, :], 0, in_size - 1)
    M = np.zeros((out_size, in_size), np.float32)
    np.add.at(M, (np.repeat(i, 4), idx.reshape(-1).astype(np.int64)),
              w.reshape(-1).astype(np.float32))
    return M


def bicubic_upsample(x, scale):
    N, C, H, W = x.shape
    Ho, Wo = H * scale, W * scale
    Mh = jnp.asarray(_cubic_matrix_np(H, Ho, scale))        # (Ho, H)
    Mw = jnp.asarray(_cubic_matrix_np(W, Wo, scale))        # (Wo, W)
    # width pass: (N*C*H, W) @ (W, Wo)
    y = matmul(x.reshape(N * C * H, W), Mw.T, compute_dtype=F32)
    y = y.reshape(N * C, H, Wo)
    # height pass: left-multiply Mh on the already H-oriented slabs (no transposes)
    rows = [matmul(Mh, y[i], compute_dtype=F32) for i in range(N * C)]
    return jnp.stack(rows, 0).reshape(N, C, Ho, Wo)


# ----------------------------------------------------------------------------
# Parameters (deterministic synthetic init)
# ----------------------------------------------------------------------------
class KeyGen:
    def __init__(self, seed=0):
        self.key = jax.random.PRNGKey(seed)
        self.i = 0

    def __call__(self):
        self.i += 1
        return jax.random.fold_in(self.key, self.i)


def conv_p(kg, cin, cout, k):
    w = jax.random.normal(kg(), (cout, cin, k, k), F32) / np.sqrt(cin * k * k)
    b = jax.random.normal(kg(), (cout,), F32) * 0.01
    return {"w": w, "b": b}


def deconv_p(kg, cin, cout, k):
    w = jax.random.normal(kg(), (cin, cout, k, k), F32) / np.sqrt(cin * k * k)
    b = jax.random.normal(kg(), (cout,), F32) * 0.01
    return {"w": w, "b": b}


def conv_block(x, p, stride, padding, act=None, residual=None):
    return conv2d(x, p["w"], p["b"], stride, padding, act, residual)


def deconv_block(x, p, act=None):
    return deconv2d(x, p["w"], p["b"], act)


# -------------------- sub-modules --------------------
def make_kg(kg, type_, nf, filter_size, g):
    return {
        "type": type_,
        "conv1": conv_p(kg, nf, nf, 5),
        "conv2": deconv_p(kg, nf, nf, 5) if type_ == "up" else conv_p(kg, nf, nf, 5),
        "conv3": conv_p(kg, nf, filter_size * filter_size * g, 1),
    }


def kg_forward(p, x):
    y = conv_block(x, p["conv1"], 1, 2, act="prelu")
    if p["type"] == "down":
        y = conv_block(y, p["conv2"], 2, 2, act="prelu")
    elif p["type"] == "up":
        y = deconv_block(y, p["conv2"], act="prelu")
    else:
        y = conv_block(y, p["conv2"], 1, 2, act="prelu")
    return conv_block(y, p["conv3"], 1, 0, act=None)


def make_jbf(kg, type_, nf, ksize, padding, filter_size, g):
    # NOTE: JBF.bottleneck exists in __init__ but is never used in forward -> omitted.
    return {
        "filter_size": filter_size, "g": g, "padding": padding,
        "target_kg": make_kg(kg, "general", nf, filter_size, g),
        "guidance_kg": make_kg(kg, type_, nf, filter_size, g),
        "jbf_conv1": conv_p(kg, nf, nf, ksize),
        "jbf_conv2": conv_p(kg, nf, nf, ksize),
    }


def jbf_forward(p, source, guidance):
    rk = kg_forward(p["target_kg"], source)
    gk = kg_forward(p["guidance_kg"], guidance)
    jbf_new = jbf_filter(source, rk, gk, p["filter_size"], p["g"])
    y = conv_block(jbf_new, p["jbf_conv1"], 1, p["padding"], act="prelu")
    # residual (source) add fused into the conv epilogue
    return conv_block(y, p["jbf_conv2"], 1, p["padding"], act=None, residual=source)


def make_inv_fusion(kg, nf, ksize, padding, fs, g):
    return {"low": make_jbf(kg, "down", nf, ksize, padding, fs, g),
            "high": make_jbf(kg, "up", nf, ksize, padding, fs, g),
            "update": make_jbf(kg, "down", nf, ksize, padding, fs, g)}


def inv_fusion_forward(p, low, high):
    low_n = jbf_forward(p["low"], low, high)
    high_n = jbf_forward(p["high"], high, low)
    return jbf_forward(p["update"], low_n, high_n)


def make_ms_fusion(kg, nf, ksize, padding, fs, g):
    return {"low": make_jbf(kg, "down", nf, ksize, padding, fs, g),
            "high": make_jbf(kg, "up", nf, ksize, padding, fs, g),
            "update": make_jbf(kg, "up", nf, ksize, padding, fs, g)}


def ms_fusion_forward(p, low, high):
    low_n = jbf_forward(p["low"], low, high)
    high_n = jbf_forward(p["high"], high, low)
    return jbf_forward(p["update"], high_n, low_n)


def make_rdb(kg, G0, G, C):
    return {"convs": [conv_p(kg, G0 + c * G, G, 3) for c in range(C)],
            "lff": conv_p(kg, G0 + C * G, G0, 1)}


def rdb_forward(p, x):
    cur = x
    for cp in p["convs"]:
        y = conv2d(cur, cp["w"], cp["b"], 1, 1, act="relu")
        cur = jnp.concatenate([cur, y], axis=1)
    # local residual fused into the 1x1 LFF conv
    return conv2d(cur, p["lff"]["w"], p["lff"]["b"], 1, 0, act=None, residual=x)


def make_sr_stage(kg, nf, ksize, padding, fs, g):
    return {"rdb": make_rdb(kg, 32, nf, 8),
            "jbf1": make_jbf(kg, "general", nf, ksize, padding, fs, g),
            "jbf2": make_jbf(kg, "general", nf, ksize, padding, fs, g),
            "tensor": conv_p(kg, nf, nf, ksize),
            "up": deconv_p(kg, nf, nf, ksize)}


def sr_stage_forward(p, depth, color, padding):
    dt = rdb_forward(p["rdb"], depth)
    dt = jbf_forward(p["jbf1"], dt, color)
    dt = jbf_forward(p["jbf2"], dt, color)
    # depth = depth + tensor(dt), fused into the conv epilogue
    depth = conv_block(dt, p["tensor"], 1, padding, act=None, residual=depth)
    return deconv_block(depth, p["up"], act="prelu")


def make_color_fun(kg, nf, ksize):
    return {"feature": conv_p(kg, nf, nf, ksize)}


def color_fun_forward(p, x, padding):
    x = conv_block(x, p["feature"], 1, padding, act="prelu")
    return maxpool2d(x, 5, 2, 2)


# -------------------- DepthNetX8 --------------------
def make_model(seed=0, n_feats=32):
    kg = KeyGen(seed)
    nf, ksize, padding, fs, g = n_feats, 5, 2, 7, 8
    return {
        "color_head1": conv_p(kg, 3, nf, 7),
        "color_head2": conv_p(kg, nf, nf, ksize),
        "depth_head1": conv_p(kg, 1, nf, ksize),
        "depth_head2": conv_p(kg, nf, nf, ksize),
        "sr_stage": [make_sr_stage(kg, nf, ksize, padding, fs, g) for _ in range(4)],
        "color_fun": [make_color_fun(kg, nf, ksize) for _ in range(3)],
        "ms_fusion": [make_ms_fusion(kg, nf, ksize, padding, fs, g) for _ in range(2)],
        "inv_fusion": make_inv_fusion(kg, nf, ksize, padding, fs, g),
        "depth_recon": conv_p(kg, nf, 1, ksize),
    }


def depthnet_x8_forward(params, depth, color, scale=8):
    padding = 2
    res = bicubic_upsample(depth, scale)

    d = conv_block(depth, params["depth_head1"], 1, padding, act="prelu")
    d = conv_block(d, params["depth_head2"], 1, padding, act="prelu")
    c = conv_block(color, params["color_head1"], 1, 3, act="prelu")
    c = conv_block(c, params["color_head2"], 1, padding, act="prelu")

    c_x8 = color_fun_forward(params["color_fun"][0], c, padding)
    c_x4 = color_fun_forward(params["color_fun"][1], c_x8, padding)
    c_x2 = color_fun_forward(params["color_fun"][2], c_x4, padding)

    d_x2 = sr_stage_forward(params["sr_stage"][0], d, c_x2, padding)
    d_x4 = sr_stage_forward(params["sr_stage"][1], d_x2, c_x4, padding)
    up_x4 = ms_fusion_forward(params["ms_fusion"][0], d_x2, d_x4)
    d_x8 = sr_stage_forward(params["sr_stage"][2], up_x4, c_x8, padding)
    up_x8 = ms_fusion_forward(params["ms_fusion"][1], up_x4, d_x8)
    d_x16 = sr_stage_forward(params["sr_stage"][3], up_x8, c, padding)
    up_x8 = inv_fusion_forward(params["inv_fusion"], up_x8, d_x16)

    # final bicubic residual fused into the depth_recon conv epilogue
    return conv_block(up_x8, params["depth_recon"], 1, padding, act=None,
                      residual=res)


if __name__ == "__main__":
    key = jax.random.PRNGKey(0)
    kd, kc = jax.random.split(key)
    B, H, W, SCALE = 1, 4, 4, 8
    depth = jax.random.normal(kd, (B, 1, H, W), F32)
    color = jax.random.normal(kc, (B, 3, H * SCALE, W * SCALE), F32)

    params = make_model(seed=0, n_feats=32)
    out = depthnet_x8_forward(params, depth, color, scale=SCALE)
    out = jax.block_until_ready(out)

    assert out.shape == (B, 1, H * SCALE, W * SCALE), out.shape
    assert bool(jnp.all(jnp.isfinite(out)))
    print("KERNEL_OK")
</pallas_src>

<mosaic_0001>
module attributes {stable_mosaic.version = 11 : i64} {
  func.func @_mm_kernel(%arg0: i32, %arg1: memref<4x4xf32, #tpu.memory_space<vmem>>, %arg2: memref<4x32xf32, #tpu.memory_space<vmem>>, %arg3: memref<4x32xf32, #tpu.memory_space<vmem>>) attributes {dimension_semantics = [#tpu.dimension_semantics<parallel>], iteration_bounds = array<i64: 1>, scalar_prefetch = 0 : i64, scratch_operands = 0 : i64, tpu.core_type = #tpu.core_type<tc>, window_params = [{pipeline_mode = #tpu.pipeline_mode<synchronous>, transform_indices = @transform_0, window_bounds = array<i64: 4, 4>}, {transform_indices = @transform_1, window_bounds = array<i64: 4, 32>}, {transform_indices = @transform_2, window_bounds = array<i64: 4, 32>}]} {
    %c0 = arith.constant 0 : index
    %c0_0 = arith.constant 0 : index
    %0 = vector.load %arg1[%c0, %c0_0] : memref<4x4xf32, #tpu.memory_space<vmem>>, vector<4x4xf32>
    %c0_1 = arith.constant 0 : index
    %c0_2 = arith.constant 0 : index
    %1 = vector.load %arg2[%c0_1, %c0_2] : memref<4x32xf32, #tpu.memory_space<vmem>>, vector<4x32xf32>
    %cst = arith.constant dense<0.000000e+00> : vector<4x32xf32>
    %2 = tpu.matmul %0, %1, %cst {dimension_numbers = #tpu.dot_dimension_numbers<[1], [0], [0], [1], [0, 0, 1, 1], [], []>} : vector<4x4xf32>, vector<4x32xf32>, vector<4x32xf32> -> vector<4x32xf32>
    %c0_3 = arith.constant 0 : index
    %c0_4 = arith.constant 0 : index
    %3 = vector.load %arg3[%c0_3, %c0_4] : memref<4x32xf32, #tpu.memory_space<vmem>>, vector<4x32xf32>
    tpu.vector_store %arg3[%c0_3, %c0_4], %2 {strides = array<i32>} : memref<4x32xf32, #tpu.memory_space<vmem>>, vector<4x32xf32>,
    return
  }
  func.func @transform_0(%arg0: i32) -> (i32, i32) {
    %c0_i32 = arith.constant 0 : i32
    %c0_i32_0 = arith.constant 0 : i32
    %c0_i32_1 = arith.constant 0 : i32
    return %c0_i32, %c0_i32_0 : i32, i32
  }
  func.func @transform_1(%arg0: i32) -> (i32, i32) {
    %c0_i32 = arith.constant 0 : i32
    %c0_i32_0 = arith.constant 0 : i32
    return %c0_i32, %arg0 : i32, i32
  }
  func.func @transform_2(%arg0: i32) -> (i32, i32) {
    %c0_i32 = arith.constant 0 : i32
    %c0_i32_0 = arith.constant 0 : i32
    return %c0_i32, %arg0 : i32, i32
  }
}

</mosaic_0001>

<llo_original>
// kernel: tpu_custom_call.1
$region0: #{tpu_custom_call.1}
  #allocation0 [shape = 'u32[]', space=smem, size = 0x4, offset = 0x4, fixed_abs, tag = 'smem constant byte address 0x4 - core index']
  #allocation1 [shape = 'u32[144,128]{1,0:T(1,128)}', space=vmem, size = 0x12000, scoped, tag = 'internal scratch']
  %s0 = inlined_call_operand.hbm [shape: f32[4,4], index: 0, kind: input, shape index: {}]
  %s1 = inlined_call_operand.hbm [shape: f32[4,32], index: 1, kind: input, shape index: {}]
  %s2 = inlined_call_operand.hbm [shape: f32[4,32], index: 2, kind: output, shape index: {}]
  %s3 = sld [smem:[#allocation0]]
  $region26: #{tpu_custom_call.1} parent=0
    _
  %s5 = ssub.s32 1, %s3
  %s6 = scalar_select 0, %s5, %s3
  $region1: #{tpu_custom_call.1} parent=0
    #allocation2 [shape = 'u8[2048]{0}', space=vmem, size = 0x800, scoped, tag = 'input window, operand 0, single buffered']
    #allocation3 [shape = 's32[1]{0}', space=sflag, size = 0x4, scoped, tag = 'scoped memory for tpu_custom_call.1']
    #allocation4 [shape = 's32[1]{0}', space=sflag, size = 0x4, scoped, tag = 'scoped memory for tpu_custom_call.1']
    #allocation5 [shape = 'u8[2048]{0}', space=vmem, size = 0x800, scoped, tag = 'input window, operand 1, single buffered']
    #allocation6 [shape = 's32[1]{0}', space=sflag, size = 0x4, scoped, tag = 'scoped memory for tpu_custom_call.1']
    #allocation7 [shape = 'u8[2048]{0}', space=vmem, size = 0x800, scoped, tag = 'output window, operand 0, single buffered']
    %7 = vsyncpa [#allocation3], 0
    %8 = vsyncpa [#allocation6], 0
    %9 = vsyncpa [#allocation4], 0
    // Predicated region
    $region2: #{tpu_custom_call.1} parent=1 // pred_check
      _
    $region3: #{tpu_custom_call.1} parent=1 // pred_check_branch
      %11 = sbr.rel (0) target = $region5
    $region4: #{tpu_custom_call.1} parent=1 // pred_region
      %s13 = ssub.s32 64, 64
      %14 = vsyncadd [#allocation3], %s13
      %s16 = sshll.u32 [#allocation2], 4
      %s17 = int_to_ptr.vmem [resolvable:$true] %s16
      %19 = dma.hbm_to_vmem [thread:$0]  %s0, 64, %s17, [#allocation3]
    $region5: #{tpu_custom_call.1} parent=1 // pred_fallthru
      _
    // Predicated region
    $region6: #{tpu_custom_call.1} parent=1 // pred_check
      _
    $region7: #{tpu_custom_call.1} parent=1 // pred_check_branch
      %21 = sbr.rel (0) target = $region9
    $region8: #{tpu_custom_call.1} parent=1 // pred_region
      %s23 = ssub.s32 64, 64
      %24 = vsyncadd [#allocation6], %s23
      %s26 = sshll.u32 [#allocation5], 4
      %s27 = int_to_ptr.vmem [resolvable:$true] %s26
      %29 = dma.hbm_to_vmem [thread:$0]  %s1, 64, %s27, [#allocation6]
    $region9: #{tpu_custom_call.1} parent=1 // pred_fallthru
      _
    // Predicated region
    $region10: #{tpu_custom_call.1} parent=1 // pred_check
      _
    $region11: #{tpu_custom_call.1} parent=1 // pred_check_branch
      %31 = sbr.rel (0) target = $region13
    $region12: #{tpu_custom_call.1} parent=1 // pred_region
      %32 = dma.done [#allocation3], 64
    $region13: #{tpu_custom_call.1} parent=1 // pred_fallthru
      _
    // Predicated region
    $region14: #{tpu_custom_call.1} parent=1 // pred_check
      _
    $region15: #{tpu_custom_call.1} parent=1 // pred_check_branch
      %34 = sbr.rel (0) target = $region17
    $region16: #{tpu_custom_call.1} parent=1 // pred_region
      %35 = dma.done [#allocation6], 64
    $region17: #{tpu_custom_call.1} parent=1 // pred_fallthru
      _
    %v36 = vld [vmem:[#allocation2] sm:$0xf]
    %v37 = vld [vmem:[#allocation5] sm:$0xf]
    %vm38 = vcmask 31744
    %v40 = vsel %vm38, %v36, 0
    %vm42 = vcmask 1043456
    %v44 = vsel %vm42, %v37, 0
    %46 = vmatprep.subr.mxu0 0.0
    %47 = vmatpush1.msra.mxu0 %v44
    %48 = vmatprep.subr.mxu0 0.0
    %49 = vmatpush1.msra.mxu0 0.0
    %50 = vmatprep.subr.mxu0 0.0
    %51 = vmatpush1.msra.mxu0 0.0
    %52 = vmatprep.subr.mxu0 0.0
    %53 = vmatpush1.msra.mxu0 0.0
    %54 = vmatprep.subr.mxu0 0.0
    %55 = vmatpush1.msra.mxu0 0.0
    %56 = vmatprep.subr.mxu0 0.0
    %57 = vmatpush1.msra.mxu0 0.0
    %58 = vmatprep.subr.mxu0 0.0
    %59 = vmatpush1.msra.mxu0 0.0
    %60 = vmatprep.subr.mxu0 0.0
    %61 = vmatpush1.msra.mxu0 0.0
    %62 = vmatprep.subr.mxu0 0.0
    %63 = vmatpush1.msra.mxu0 0.0
    %64 = vmatprep.subr.mxu0 0.0
    %65 = vmatpush1.msra.mxu0 0.0
    %66 = vmatprep.subr.mxu0 0.0
    %67 = vmatpush1.msra.mxu0 0.0
    %68 = vmatprep.subr.mxu0 0.0
    %69 = vmatpush1.msra.mxu0 0.0
    %70 = vmatprep.subr.mxu0 0.0
    %71 = vmatpush1.msra.mxu0 0.0
    %72 = vmatprep.subr.mxu0 0.0
    %73 = vmatpush1.msra.mxu0 0.0
    %74 = vmatprep.subr.mxu0 0.0
    %75 = vmatpush1.msra.mxu0 0.0
    %76 = vmatprep.subr.mxu0 0.0
    %77 = vmatpush1.msra.mxu0 0.0
    %78 = vmatprep.subr.mxu0 0.0
    %79 = vmatpush1.msra.mxu0 0.0
    %80 = vmatprep.subr.mxu0 0.0
    %81 = vmatpush1.msra.mxu0 0.0
    %82 = vmatprep.subr.mxu0 0.0
    %83 = vmatpush1.msra.mxu0 0.0
    %84 = vmatprep.subr.mxu0 0.0
    %85 = vmatpush1.msra.mxu0 0.0
    %86 = vmatprep.subr.mxu0 0.0
    %87 = vmatpush1.msra.mxu0 0.0
    %88 = vmatprep.subr.mxu0 0.0
    %89 = vmatpush1.msra.mxu0 0.0
    %90 = vmatprep.subr.mxu0 0.0
    %91 = vmatpush1.msra.mxu0 0.0
    %92 = vmatprep.subr.mxu0 0.0
    %93 = vmatpush1.msra.mxu0 0.0
    %94 = vmatprep.subr.mxu0 0.0
    %95 = vmatpush1.msra.mxu0 0.0
    %96 = vmatprep.subr.mxu0 0.0
    %97 = vmatpush1.msra.mxu0 0.0
    %98 = vmatprep.subr.mxu0 0.0
    %99 = vmatpush1.msra.mxu0 0.0
    %100 = vmatprep.subr.mxu0 0.0
    %101 = vmatpush1.msra.mxu0 0.0
    %102 = vmatprep.subr.mxu0 0.0
    %103 = vmatpush1.msra.mxu0 0.0
    %104 = vmatprep.subr.mxu0 0.0
    %105 = vmatpush1.msra.mxu0 0.0
    %106 = vmatprep.subr.mxu0 0.0
    %107 = vmatpush1.msra.mxu0 0.0
    %108 = vmatprep.subr.mxu0 0.0
    %109 = vmatpush1.msra.mxu0 0.0
    %110 = vmatprep.mubr.f32.mxu0 0.0
    %111 = vmatmul.mubr.f32.gmra.mrb[0].mxu0 %v40
    %v112 = vpop.f32.mrb[0].mxu0
    %v113 = vadd.f32 0.0, %v112
    %v114 = vpop.f32.mrb[0].mxu0
    %115 = vdwg.mxu0
    %vm116 = vcmask 257024
    %117 = vst.msk [vmem:[#allocation7] sm:$0xf] %vm116, %v113
    // Predicated region
    $region18: #{tpu_custom_call.1} parent=1 // pred_check
      _
    $region19: #{tpu_custom_call.1} parent=1 // pred_check_branch
      %119 = sbr.rel (0) target = $region21
    $region20: #{tpu_custom_call.1} parent=1 // pred_region
      %s121 = ssub.s32 64, 64
      %122 = vsyncadd [#allocation4], %s121
      %s124 = sshll.u32 [#allocation7], 4
      %s125 = int_to_ptr.vmem [resolvable:$true] %s124
      %127 = dma.vmem_to_hbm [thread:$0]  %s125, 64, %s2, [#allocation4]
    $region21: #{tpu_custom_call.1} parent=1 // pred_fallthru
      _
    // Predicated region
    $region22: #{tpu_custom_call.1} parent=1 // pred_check
      _
    $region23: #{tpu_custom_call.1} parent=1 // pred_check_branch
      %129 = sbr.rel (0) target = $region25
    $region24: #{tpu_custom_call.1} parent=1 // pred_region
      %130 = dma.done [#allocation4], 64
    $region25: #{tpu_custom_call.1} parent=1 // pred_fallthru
      _
    %131 = vsyncpa [#allocation3], 1
    %132 = vsyncpa [#allocation6], 1
    %133 = vsyncpa [#allocation4], 1

</llo_original>
